<compile_context>
chip_gen: v6e
topology: v6e:2x2x1
jax: 0.10.0
libtpu: 0.0.40
codegen_flags: <defaults>
</compile_context>

<pallas_src>
import functools
import math

import jax
import jax.numpy as jnp
from jax.experimental import pallas as pl
from jax.experimental.pallas import tpu as pltpu

_VMEM_LIMIT_BYTES = 40 * 1024 * 1024   # safe on v5e/v6e (128 MiB) and v7x (64 MiB)
_TILE_BUDGET_BYTES = 14 * 1024 * 1024  # double-buffered streams + f32 temporaries


def _round_up(x, m):
    return ((x + m - 1) // m) * m


def _sublane_pack(dtype):
    itemsize = jnp.dtype(dtype).itemsize
    return {1: 32, 2: 16}.get(itemsize, 8)


def _pick_row_tile(rows, features, dtype, *, stream_bytes, temp_bytes):
    """Largest row tile whose double-buffered HBM<->VMEM streams (sized in the
    native dtype via `stream_bytes` = sum of per-element bytes over all
    in/out streams) plus in-kernel f32 temporaries (`temp_bytes` per element)
    fit the per-call VMEM budget.  No forced minimum step count on single-TC
    chips; only a soft >=4-step split for larger inputs so both v7x cores get
    work."""
    pack = _sublane_pack(dtype)
    per_row = features * (2 * stream_bytes + temp_bytes)
    tile = max(pack, _TILE_BUDGET_BYTES // per_row)
    tile = min(tile, 2048)
    if rows >= 4 * pack:                                   # only bites when small
        tile = min(tile, _round_up((rows + 3) // 4, pack))
    tile = max(pack, (tile // pack) * pack)
    tile = min(tile, _round_up(rows, pack))                # never exceed row count
    return tile


# ----------------------------- LayerNorm kernel -----------------------------

def _layernorm_kernel(x_ref, a_ref, b_ref, o_ref, *, eps, features):
    # x_ref: (tile_rows, features); a_ref/b_ref: (1, features)
    x = x_ref[...].astype(jnp.float32)

    mean = jnp.mean(x, axis=-1, keepdims=True)
    xc = x - mean
    # torch.std default: unbiased (Bessel correction, divide by N-1)
    var = jnp.sum(xc * xc, axis=-1, keepdims=True) * jnp.float32(1.0 / (features - 1))
    std = jnp.sqrt(var)

    # One reciprocal per row (EUP slot), then a broadcast multiply (VPU),
    # instead of a full-width per-element divide.
    inv = pl.reciprocal(std + jnp.float32(eps), approx=False)

    a = a_ref[...].astype(jnp.float32)
    b = b_ref[...].astype(jnp.float32)
    o_ref[...] = ((xc * inv) * a + b).astype(o_ref.dtype)


def layer_norm(x, a_2, b_2, eps=1e-6):
    """x: (..., features); a_2, b_2: (features,). Matches the PyTorch module."""
    orig_shape = x.shape
    features = orig_shape[-1]
    assert features >= 2, "unbiased std (ddof=1) requires features >= 2"
    rows = math.prod(orig_shape[:-1]) if len(orig_shape) > 1 else 1
    x2d = x.reshape(rows, features)
    a2d = a_2.reshape(1, features)
    b2d = b_2.reshape(1, features)

    itemsize = jnp.dtype(x.dtype).itemsize
    tile = _pick_row_tile(rows, features, x.dtype,
                          stream_bytes=2 * itemsize,   # x in + out
                          temp_bytes=12)               # ~3 live f32 temporaries
    grid = (pl.cdiv(rows, tile),)   # no padding; Pallas masks the partial block

    cost = pl.CostEstimate(
        flops=8 * rows * features,
        transcendentals=2 * rows,
        bytes_accessed=2 * rows * features * itemsize
        + 2 * features * jnp.dtype(a_2.dtype).itemsize,
    )

    out2d = pl.pallas_call(
        functools.partial(_layernorm_kernel, eps=float(eps), features=features),
        out_shape=jax.ShapeDtypeStruct((rows, features), x.dtype),
        grid_spec=pltpu.PrefetchScalarGridSpec(
            num_scalar_prefetch=0,
            grid=grid,
            in_specs=[
                pl.BlockSpec((tile, features), lambda i: (i, 0)),
                pl.BlockSpec((1, features), lambda i: (0, 0)),
                pl.BlockSpec((1, features), lambda i: (0, 0)),
            ],
            out_specs=pl.BlockSpec((tile, features), lambda i: (i, 0)),
        ),
        compiler_params=pltpu.CompilerParams(
            dimension_semantics=("parallel",),
            vmem_limit_bytes=_VMEM_LIMIT_BYTES,
        ),
        cost_estimate=cost,
    )(x2d, a2d, b2d)

    return out2d.reshape(orig_shape)


# --------------------- fused residual-add + dropout kernel -------------------

def _residual_add_kernel(x_ref, y_ref, o_ref):
    o_ref[...] = (x_ref[...] + y_ref[...]).astype(o_ref.dtype)


def _residual_dropout_kernel(x_ref, y_ref, r_ref, o_ref, *, threshold, scale):
    # r_ref holds uniform int32 bits; drop iff r < threshold (pure integer
    # compare, no int->float convert).  Arithmetic stays in the native dtype
    # (bf16 on v6e/v7x halves VPU work and vreg pressure).
    keep = r_ref[...] >= jnp.int32(threshold)
    y = jnp.where(keep, y_ref[...] * scale, 0.0)
    o_ref[...] = (x_ref[...] + y).astype(o_ref.dtype)


def _fold_lane_dense(rows, features):
    """For purely elementwise kernels: reshape (rows, F) -> (rows/k, k*F) so
    the lane dimension is a multiple of 128 (unmasked full-lane stores)."""
    if features % 128 == 0:
        return rows, features
    k = 128 // math.gcd(features, 128)
    if k > 1 and rows % k == 0:
        return rows // k, features * k
    return rows, features


def residual_dropout(x, y, *, rate=0.0, rng_key=None):
    """out = x + dropout(y), inverted dropout with keep-prob (1 - rate)."""
    assert x.shape == y.shape and x.dtype == y.dtype
    orig_shape = x.shape
    features = orig_shape[-1]
    rows = math.prod(orig_shape[:-1]) if len(orig_shape) > 1 else 1
    rows2, feat2 = _fold_lane_dense(rows, features)
    x2d = x.reshape(rows2, feat2)
    y2d = y.reshape(rows2, feat2)

    rate = float(rate)
    itemsize = jnp.dtype(x.dtype).itemsize

    if rate <= 0.0:
        tile = _pick_row_tile(rows2, feat2, x.dtype,
                              stream_bytes=3 * itemsize, temp_bytes=4)
        grid = (pl.cdiv(rows2, tile),)
        cost = pl.CostEstimate(flops=rows2 * feat2, transcendentals=0,
                               bytes_accessed=3 * rows2 * feat2 * itemsize)
        out2d = pl.pallas_call(
            _residual_add_kernel,
            out_shape=jax.ShapeDtypeStruct((rows2, feat2), x.dtype),
            grid_spec=pltpu.PrefetchScalarGridSpec(
                num_scalar_prefetch=0,
                grid=grid,
                in_specs=[pl.BlockSpec((tile, feat2), lambda i: (i, 0)),
                          pl.BlockSpec((tile, feat2), lambda i: (i, 0))],
                out_specs=pl.BlockSpec((tile, feat2), lambda i: (i, 0)),
            ),
            compiler_params=pltpu.CompilerParams(
                dimension_semantics=("parallel",),
                vmem_limit_bytes=_VMEM_LIMIT_BYTES,
            ),
            cost_estimate=cost,
            input_output_aliases={1: 0},   # write the result over y's buffer
        )(x2d, y2d)
        return out2d.reshape(orig_shape)

    assert rate < 1.0, "dropout rate must be < 1"
    if rng_key is None:
        rng_key = jax.random.PRNGKey(0)
    # TODO(synk): the on-chip PRNG (pltpu.prng_seed / prng_random_bits) would
    # avoid streaming a full random tensor from HBM, but it has no
    # interpret/CPU lowering, so the bits are generated with jax.random here.
    bits = jax.random.bits(rng_key, (rows2, feat2), dtype=jnp.uint32)
    r2d = jax.lax.bitcast_convert_type(bits, jnp.int32)

    thr_u = min(int(round(rate * (2.0 ** 32))), 2 ** 32 - 1)
    threshold = thr_u - 2 ** 31           # same threshold viewed as signed int32
    scale = 1.0 / (1.0 - rate)

    tile = _pick_row_tile(rows2, feat2, x.dtype,
                          stream_bytes=3 * itemsize + 4,   # x, y, out + int32 bits
                          temp_bytes=8)
    grid = (pl.cdiv(rows2, tile),)
    cost = pl.CostEstimate(flops=4 * rows2 * feat2, transcendentals=0,
                           bytes_accessed=rows2 * feat2 * (3 * itemsize + 4))

    out2d = pl.pallas_call(
        functools.partial(_residual_dropout_kernel,
                          threshold=threshold, scale=scale),
        out_shape=jax.ShapeDtypeStruct((rows2, feat2), x.dtype),
        grid_spec=pltpu.PrefetchScalarGridSpec(
            num_scalar_prefetch=0,
            grid=grid,
            in_specs=[pl.BlockSpec((tile, feat2), lambda i: (i, 0)),
                      pl.BlockSpec((tile, feat2), lambda i: (i, 0)),
                      pl.BlockSpec((tile, feat2), lambda i: (i, 0))],
            out_specs=pl.BlockSpec((tile, feat2), lambda i: (i, 0)),
        ),
        compiler_params=pltpu.CompilerParams(
            dimension_semantics=("parallel",),
            vmem_limit_bytes=_VMEM_LIMIT_BYTES,
        ),
        cost_estimate=cost,
        input_output_aliases={1: 0},       # write the result over y's buffer
    )(x2d, y2d, r2d)

    return out2d.reshape(orig_shape)


# ----------------------------- SublayerConnection ----------------------------

def sublayer_connection(x, a_2, b_2, sublayer, *, dropout_rate=0.0, eps=1e-6,
                        dropout_rng=None):
    """out = x + dropout(sublayer(LayerNorm(x))).

    `sublayer` is an arbitrary JAX callable (attention / FFN) applied between
    the two Pallas kernels."""
    # TODO(synk): the user-supplied `sublayer` stays a plain JAX function; only
    # the norm and the residual+dropout passes are Pallas kernels.
    normed = layer_norm(x, a_2, b_2, eps=eps)
    y = sublayer(normed)
    return residual_dropout(x, y, rate=dropout_rate, rng_key=dropout_rng)


# ------------------------------- reference ----------------------------------

def _reference_layer_norm(x, a_2, b_2, eps=1e-6):
    x32 = x.astype(jnp.float32)
    mean = jnp.mean(x32, axis=-1, keepdims=True)
    std = jnp.std(x32, axis=-1, keepdims=True, ddof=1)   # unbiased, like torch
    return (a_2 * (x32 - mean) / (std + eps) + b_2).astype(x.dtype)


if __name__ == "__main__":
    key = jax.random.PRNGKey(0)
    batch, seq, hidden = 2, 8, 32
    k1, k2, k3, k4 = jax.random.split(key, 4)

    x = jax.random.normal(k1, (batch, seq, hidden), dtype=jnp.float32)
    # nn.Parameter(torch.ones(features)) / torch.zeros(features)
    a_2 = jnp.ones((hidden,), dtype=jnp.float32)
    b_2 = jnp.zeros((hidden,), dtype=jnp.float32)

    # Deterministic stand-in for the sublayer (e.g. attention / FFN).
    w = jax.random.normal(k2, (hidden, hidden), dtype=jnp.float32) * 0.1
    sublayer = lambda h: jnp.tanh(h @ w)

    # --- dropout=0 path: must reproduce x + sublayer(norm(x)) ---
    out = sublayer_connection(x, a_2, b_2, sublayer, dropout_rate=0.0)
    out = jax.block_until_ready(out)
    ref = x + sublayer(_reference_layer_norm(x, a_2, b_2, eps=1e-6))
    assert out.shape == x.shape
    assert jnp.allclose(out, ref, atol=1e-5, rtol=1e-5), "sublayer mismatch"

    # --- lane-dense feature size (multiple of 128): validate the fast layout ---
    hidden2 = 256
    x2 = jax.random.normal(k3, (batch, seq, hidden2), dtype=jnp.float32)
    a2 = jnp.ones((hidden2,), dtype=jnp.float32)
    b2 = jnp.zeros((hidden2,), dtype=jnp.float32)
    n2 = jax.block_until_ready(layer_norm(x2, a2, b2, eps=1e-6))
    ref2 = _reference_layer_norm(x2, a2, b2, eps=1e-6)
    assert jnp.allclose(n2, ref2, atol=1e-5, rtol=1e-5), "layernorm mismatch"

    # --- dropout>0 path (identity sublayer): kept values scaled, ~rate dropped ---
    rate = 0.1
    out_drop = sublayer_connection(x2, a2, b2, lambda h: h,
                                   dropout_rate=rate, dropout_rng=k4)
    out_drop = jax.block_until_ready(out_drop)
    ref_y = _reference_layer_norm(x2, a2, b2, eps=1e-6)
    dropped = jnp.logical_and(out_drop == x2, ref_y != 0)
    kept = jnp.logical_not(dropped)
    assert jnp.allclose(jnp.where(kept, out_drop, 0.0),
                        jnp.where(kept, x2 + ref_y / (1.0 - rate), 0.0),
                        atol=1e-4, rtol=1e-4), "kept values not scaled correctly"
    drop_frac = float(jnp.mean(dropped.astype(jnp.float32)))
    assert 0.02 < drop_frac < 0.30, f"unexpected dropout fraction {drop_frac}"

    print("KERNEL_OK")
</pallas_src>

<mosaic_0001>
module attributes {stable_mosaic.version = 11 : i64} {
  func.func @_layernorm_kernel(%arg0: i32, %arg1: memref<16x32xf32, #tpu.memory_space<vmem>>, %arg2: memref<1x32xf32, #tpu.memory_space<vmem>>, %arg3: memref<1x32xf32, #tpu.memory_space<vmem>>, %arg4: memref<16x32xf32, #tpu.memory_space<vmem>>) attributes {dimension_semantics = [#tpu.dimension_semantics<parallel>], iteration_bounds = array<i64: 1>, scalar_prefetch = 0 : i64, scratch_operands = 0 : i64, tpu.core_type = #tpu.core_type<tc>, window_params = [{transform_indices = @transform_0, window_bounds = array<i64: 16, 32>}, {pipeline_mode = #tpu.pipeline_mode<synchronous>, transform_indices = @transform_1, window_bounds = array<i64: 1, 32>}, {pipeline_mode = #tpu.pipeline_mode<synchronous>, transform_indices = @transform_2, window_bounds = array<i64: 1, 32>}, {transform_indices = @transform_3, window_bounds = array<i64: 16, 32>}]} {
    %c0 = arith.constant 0 : index
    %c0_0 = arith.constant 0 : index
    %0 = vector.load %arg1[%c0, %c0_0] : memref<16x32xf32, #tpu.memory_space<vmem>>, vector<16x32xf32>
    %cst = arith.constant dense<0.000000e+00> : vector<16xf32>
    %1 = vector.multi_reduction <add>, %0, %cst [1] : vector<16x32xf32> to vector<16xf32>
    %2 = vector.shape_cast %1 : vector<16xf32> to vector<16x1xf32>
    %cst_1 = arith.constant 3.200000e+01 : f32
    %3 = vector.broadcast %cst_1 : f32 to vector<16x1xf32>
    %4 = arith.divf %2, %3 : vector<16x1xf32>
    %5 = vector.broadcast %4 : vector<16x1xf32> to vector<16x32xf32>
    %6 = arith.subf %0, %5 : vector<16x32xf32>
    %7 = arith.mulf %6, %6 : vector<16x32xf32>
    %cst_2 = arith.constant dense<0.000000e+00> : vector<16xf32>
    %8 = vector.multi_reduction <add>, %7, %cst_2 [1] : vector<16x32xf32> to vector<16xf32>
    %9 = vector.shape_cast %8 : vector<16xf32> to vector<16x1xf32>
    %cst_3 = arith.constant 0.0322580636 : f32
    %10 = vector.broadcast %cst_3 : f32 to vector<16x1xf32>
    %11 = arith.mulf %9, %10 : vector<16x1xf32>
    %12 = math.sqrt %11 : vector<16x1xf32>
    %cst_4 = arith.constant 9.99999997E-7 : f32
    %13 = vector.broadcast %cst_4 : f32 to vector<16x1xf32>
    %14 = arith.addf %12, %13 : vector<16x1xf32>
    %15 = tpu.reciprocal %14 : vector<16x1xf32> -> vector<16x1xf32>
    %c0_5 = arith.constant 0 : index
    %c0_6 = arith.constant 0 : index
    %16 = vector.load %arg2[%c0_5, %c0_6] : memref<1x32xf32, #tpu.memory_space<vmem>>, vector<1x32xf32>
    %c0_7 = arith.constant 0 : index
    %c0_8 = arith.constant 0 : index
    %17 = vector.load %arg3[%c0_7, %c0_8] : memref<1x32xf32, #tpu.memory_space<vmem>>, vector<1x32xf32>
    %18 = vector.broadcast %15 : vector<16x1xf32> to vector<16x32xf32>
    %19 = arith.mulf %6, %18 : vector<16x32xf32>
    %20 = vector.broadcast %16 : vector<1x32xf32> to vector<16x32xf32>
    %21 = arith.mulf %19, %20 : vector<16x32xf32>
    %22 = vector.broadcast %17 : vector<1x32xf32> to vector<16x32xf32>
    %23 = arith.addf %21, %22 : vector<16x32xf32>
    %c0_9 = arith.constant 0 : index
    %c0_10 = arith.constant 0 : index
    %24 = vector.load %arg4[%c0_9, %c0_10] : memref<16x32xf32, #tpu.memory_space<vmem>>, vector<16x32xf32>
    tpu.vector_store %arg4[%c0_9, %c0_10], %23 {strides = array<i32>} : memref<16x32xf32, #tpu.memory_space<vmem>>, vector<16x32xf32>,
    return
  }
  func.func @transform_0(%arg0: i32) -> (i32, i32) {
    %c0_i32 = arith.constant 0 : i32
    %c0_i32_0 = arith.constant 0 : i32
    return %arg0, %c0_i32 : i32, i32
  }
  func.func @transform_1(%arg0: i32) -> (i32, i32) {
    %c0_i32 = arith.constant 0 : i32
    %c0_i32_0 = arith.constant 0 : i32
    %c0_i32_1 = arith.constant 0 : i32
    return %c0_i32, %c0_i32_0 : i32, i32
  }
  func.func @transform_2(%arg0: i32) -> (i32, i32) {
    %c0_i32 = arith.constant 0 : i32
    %c0_i32_0 = arith.constant 0 : i32
    %c0_i32_1 = arith.constant 0 : i32
    return %c0_i32, %c0_i32_0 : i32, i32
  }
  func.func @transform_3(%arg0: i32) -> (i32, i32) {
    %c0_i32 = arith.constant 0 : i32
    %c0_i32_0 = arith.constant 0 : i32
    return %arg0, %c0_i32 : i32, i32
  }
}

</mosaic_0001>

<llo_original>
// kernel: tpu_custom_call.1
$region0: #{tpu_custom_call.1}
  #allocation0 [shape = 'u32[]', space=smem, size = 0x4, offset = 0x4, fixed_abs, tag = 'smem constant byte address 0x4 - core index']
  #allocation1 [shape = 'u32[144,128]{1,0:T(1,128)}', space=vmem, size = 0x12000, scoped, tag = 'internal scratch']
  %s0 = inlined_call_operand.hbm [shape: f32[16,32], index: 0, kind: input, shape index: {}]
  %s1 = inlined_call_operand.vmem [shape: f32[1,32], index: 1, kind: input, shape index: {}]
  %s2 = inlined_call_operand.vmem [shape: f32[1,32], index: 2, kind: input, shape index: {}]
  %s3 = inlined_call_operand.hbm [shape: f32[16,32], index: 3, kind: output, shape index: {}]
  %s4 = sld [smem:[#allocation0]]
  $region26: #{tpu_custom_call.1} parent=0
    _
  %s6 = ssub.s32 1, %s4
  %s7 = scalar_select 0, %s6, %s4
  $region1: #{tpu_custom_call.1} parent=0
    #allocation2 [shape = 'u8[8192]{0}', space=vmem, size = 0x2000, scoped, tag = 'input window, operand 0, single buffered']
    #allocation3 [shape = 's32[1]{0}', space=sflag, size = 0x4, scoped, tag = 'scoped memory for tpu_custom_call.1']
    #allocation4 [shape = 's32[1]{0}', space=sflag, size = 0x4, scoped, tag = 'scoped memory for tpu_custom_call.1']
    #allocation5 [shape = 'u8[8192]{0}', space=vmem, size = 0x2000, scoped, tag = 'output window, operand 0, single buffered']
    %8 = vsyncpa [#allocation3], 0
    %9 = vsyncpa [#allocation4], 0
    // Predicated region
    $region2: #{tpu_custom_call.1} parent=1 // pred_check
      _
    $region3: #{tpu_custom_call.1} parent=1 // pred_check_branch
      %11 = sbr.rel (0) target = $region5
    $region4: #{tpu_custom_call.1} parent=1 // pred_region
      %s13 = ssub.s32 256, 256
      %14 = vsyncadd [#allocation3], %s13
      %s15 = sshll.u32 [#allocation2], 4
      %s16 = int_to_ptr.vmem [resolvable:$true] %s15
      %21 = dma.hbm_to_vmem [thread:$0]  %s0, 256, %s16, [#allocation3], 128, 128, 8
    $region5: #{tpu_custom_call.1} parent=1 // pred_fallthru
      _
    // Predicated region
    $region6: #{tpu_custom_call.1} parent=1 // pred_check
      _
    $region7: #{tpu_custom_call.1} parent=1 // pred_check_branch
      %23 = sbr.rel (0) target = $region9
    $region8: #{tpu_custom_call.1} parent=1 // pred_region
      _
    $region9: #{tpu_custom_call.1} parent=1 // pred_fallthru
      _
    // Predicated region
    $region10: #{tpu_custom_call.1} parent=1 // pred_check
      _
    $region11: #{tpu_custom_call.1} parent=1 // pred_check_branch
      %25 = sbr.rel (0) target = $region13
    $region12: #{tpu_custom_call.1} parent=1 // pred_region
      _
    $region13: #{tpu_custom_call.1} parent=1 // pred_fallthru
      _
    // Predicated region
    $region14: #{tpu_custom_call.1} parent=1 // pred_check
      _
    $region15: #{tpu_custom_call.1} parent=1 // pred_check_branch
      %27 = sbr.rel (0) target = $region17
    $region16: #{tpu_custom_call.1} parent=1 // pred_region
      %28 = dma.done [#allocation3], 256
    $region17: #{tpu_custom_call.1} parent=1 // pred_fallthru
      _
    %v29 = vld [vmem:[#allocation2] sm:$0xff]
    %v30 = vld [vmem:[#allocation2 + $0x8] sm:$0xff]
    %vm31 = vcmask 261120
    %v32 = vsel %vm31, %v29, 0.0
    %33 = vadd.xlane.f32.xlu0 %v32
    %v34 = vpop.xlane.xlu0 %33
    %v35 = vsel %vm31, %v30, 0.0
    %36 = vadd.xlane.f32.xlu0 %v35
    %v37 = vpop.xlane.xlu0 %36
    %v38 = vrcp.pop 32.0
    %v39 = vmul.f32 %v34, %v38
    %v40 = vmul.f32 %v37, %v38
    %v41 = vsub.f32 %v29, %v39
    %v42 = vsub.f32 %v30, %v40
    %v43 = vmul.f32 %v41, %v41
    %v44 = vmul.f32 %v42, %v42
    %v45 = vsel %vm31, %v43, 0.0
    %46 = vadd.xlane.f32.xlu0 %v45
    %v47 = vpop.xlane.xlu0 %46
    %v48 = vsel %vm31, %v44, 0.0
    %49 = vadd.xlane.f32.xlu0 %v48
    %v50 = vpop.xlane.xlu0 %49
    %v51 = vmul.f32 %v47, 0.032258064
    %v52 = vmul.f32 %v50, 0.032258064
    %v53 = vrsqrt.pop %v51
    %v54 = vmul.f32 %v51, %v53
    %vm55 = vcmp.eq.f32.partialorder %v51, inf
    %v56 = vsel %vm55, %v51, %v54
    %vm57 = vcmp.eq.f32.partialorder %v51, 0.0
    %v58 = vand.u32 %v51, 2147483648
    %v59 = vsel %vm57, %v58, %v56
    %v60 = vrsqrt.pop %v52
    %v61 = vmul.f32 %v52, %v60
    %vm62 = vcmp.eq.f32.partialorder %v52, inf
    %v63 = vsel %vm62, %v52, %v61
    %vm64 = vcmp.eq.f32.partialorder %v52, 0.0
    %v65 = vand.u32 %v52, 2147483648
    %v66 = vsel %vm64, %v65, %v63
    %v67 = vadd.f32 %v59, 1e-06
    %v68 = vadd.f32 %v66, 1e-06
    %v69 = vrcp.pop %v67
    %v70 = vrcp.pop %v68
    %v71 = vld [vmem:[%s1] sm:$0x1]
    %v72 = vld [vmem:[%s2] sm:$0x1]
    %v73 = vmul.f32 %v41, %v69
    %v74 = vmul.f32 %v42, %v70
    %v76 = vlaneseq
    %v77 = vshrl.u32 %v76, 7
    %v78 = vsub.s32 0, %v77
    %v79 = vrot.slane %v71, %v78
    %v81 = vmul.f32 %v73, %v79
    %v82 = vmul.f32 %v74, %v79
    %v84 = vlaneseq
    %v85 = vshrl.u32 %v84, 7
    %v86 = vsub.s32 0, %v85
    %v87 = vrot.slane %v72, %v86
    %v89 = vadd.f32 %v81, %v87
    %v90 = vadd.f32 %v82, %v87
    %91 = vst.msk [vmem:[#allocation5] sm:$0xff] %vm31, %v89
    %92 = vst.msk [vmem:[#allocation5 + $0x8] sm:$0xff] %vm31, %v90
    // Predicated region
    $region18: #{tpu_custom_call.1} parent=1 // pred_check
      _
    $region19: #{tpu_custom_call.1} parent=1 // pred_check_branch
      %94 = sbr.rel (0) target = $region21
    $region20: #{tpu_custom_call.1} parent=1 // pred_region
      %s96 = ssub.s32 256, 256
      %97 = vsyncadd [#allocation4], %s96
      %s98 = sshll.u32 [#allocation5], 4
      %s99 = int_to_ptr.vmem [resolvable:$true] %s98
      %104 = dma.vmem_to_hbm [thread:$0]  %s99, 256, %s3, [#allocation4], 128, 128, 8
    $region21: #{tpu_custom_call.1} parent=1 // pred_fallthru
      _
    // Predicated region
    $region22: #{tpu_custom_call.1} parent=1 // pred_check
      _
    $region23: #{tpu_custom_call.1} parent=1 // pred_check_branch
      %106 = sbr.rel (0) target = $region25
    $region24: #{tpu_custom_call.1} parent=1 // pred_region
      %107 = dma.done [#allocation4], 256
    $region25: #{tpu_custom_call.1} parent=1 // pred_fallthru
      _
    %108 = vsyncpa [#allocation3], 1
    %109 = vsyncpa [#allocation4], 1

</llo_original>
